<compile_context>
chip_gen: v7x
topology: tpu7x:2x2x1
jax: 0.10.0
libtpu: 0.0.40
codegen_flags: <defaults>
</compile_context>

<pallas_src>
import functools

import jax
import jax.numpy as jnp
from jax.experimental import pallas as pl
from jax.experimental.pallas import tpu as pltpu

LANE = 128
SUBLANE = 8


def _round_up(x, m):
    return (x + m - 1) // m * m


def mlp_kernel(x_ref, w1_ref, b1_ref, w2_ref, b2_ref, w3_ref, b3_ref,
               w4_ref, b4_ref, o_ref):
    # One (tm, in_dim) batch tile; weights/biases are VMEM-resident full blocks.
    # Cast x to the MXU compute dtype in VMEM (free on VPU; avoids an HBM cast pass).
    x = x_ref[...].astype(w1_ref.dtype)
    h = jnp.tanh(
        jnp.dot(x, w1_ref[...], preferred_element_type=jnp.float32) + b1_ref[...]
    )
    h = h.astype(w2_ref.dtype)
    h = jnp.tanh(
        jnp.dot(h, w2_ref[...], preferred_element_type=jnp.float32) + b2_ref[...]
    )
    h = h.astype(w3_ref.dtype)
    h = jnp.tanh(
        jnp.dot(h, w3_ref[...], preferred_element_type=jnp.float32) + b3_ref[...]
    )
    h = h.astype(w4_ref.dtype)
    out = jnp.dot(h, w4_ref[...], preferred_element_type=jnp.float32) + b4_ref[...]
    # Narrow (tm, out_dim) store — masked vst cost is negligible vs. writeback DMA.
    o_ref[...] = out.astype(o_ref.dtype)


def prepare_params(params, compute_dtype=jnp.bfloat16):
    """Pad/cast weights ONCE (outside the per-call hot path).

    Hidden dims are lane-padded to 128; the input dim (W1 rows) and output dim
    (W4 cols / b4) are left at their natural widths so x / out HBM traffic stays
    minimal.  Biases stay f32 (added after the f32-accumulated dot).
    """
    w1, b1, w2, b2, w3, b3, w4, b4 = params
    in_dim = w1.shape[0]
    h1, h2, h3 = w1.shape[1], w2.shape[1], w3.shape[1]
    out_dim = w4.shape[1]
    d1, d2, d3 = (_round_up(d, LANE) for d in (h1, h2, h3))

    def pad2(a, rows, cols, dtype):
        return jnp.pad(a, ((0, rows - a.shape[0]), (0, cols - a.shape[1]))).astype(dtype)

    return (
        pad2(w1, in_dim, d1, compute_dtype), pad2(b1, 1, d1, jnp.float32),
        pad2(w2, d1, d2, compute_dtype),     pad2(b2, 1, d2, jnp.float32),
        pad2(w3, d2, d3, compute_dtype),     pad2(b3, 1, d3, jnp.float32),
        pad2(w4, d3, out_dim, compute_dtype), b4.astype(jnp.float32),
    )


def mlp_forward(x, prepared_params, *, block_m=1024):
    """x: [batch, in_dim] f32; prepared_params from prepare_params()."""
    w1p, b1p, w2p, b2p, w3p, b3p, w4p, b4p = prepared_params
    batch, in_dim = x.shape
    assert w1p.shape[0] == in_dim
    d1, d2, d3 = w1p.shape[1], w2p.shape[1], w3p.shape[1]
    out_dim = w4p.shape[1]

    # --- adaptive batch tiling --------------------------------------------------
    # >=2 tiles when there's enough work (v7x megacore: both TCs get batch tiles),
    # tm = ceil(batch / n_tiles) rounded to a sublane multiple keeps padding small.
    n_tiles = max(1, pl.cdiv(batch, block_m))
    if n_tiles == 1 and batch >= 2 * SUBLANE:
        n_tiles = 2
    tm = _round_up(pl.cdiv(batch, n_tiles), SUBLANE)
    padded_batch = _round_up(batch, tm)
    if padded_batch != batch:
        x = jnp.pad(x, ((0, padded_batch - batch), (0, 0)))
    grid = (padded_batch // tm,)

    # x / out are batch-tiled (double-buffered by Pallas); weights & biases use a
    # constant index_map so they stay VMEM-resident across all grid steps.
    x_spec = pl.BlockSpec((tm, in_dim), lambda i: (i, 0))
    out_spec = pl.BlockSpec((tm, out_dim), lambda i: (i, 0))
    resident = lambda a: pl.BlockSpec(a.shape, lambda i: (0, 0))

    cost = pl.CostEstimate(
        flops=2 * padded_batch * (in_dim * d1 + d1 * d2 + d2 * d3 + d3 * out_dim),
        transcendentals=padded_batch * (d1 + d2 + d3),
        bytes_accessed=int(
            x.size * x.dtype.itemsize
            + padded_batch * out_dim * 4
            + sum(int(p.size) * p.dtype.itemsize for p in prepared_params)
        ),
    )

    out_padded = pl.pallas_call(
        mlp_kernel,
        out_shape=jax.ShapeDtypeStruct((padded_batch, out_dim), jnp.float32),
        grid=grid,
        in_specs=[x_spec,
                  resident(w1p), resident(b1p),
                  resident(w2p), resident(b2p),
                  resident(w3p), resident(b3p),
                  resident(w4p), resident(b4p)],
        out_specs=out_spec,
        compiler_params=pltpu.CompilerParams(
            dimension_semantics=("parallel",),  # v7x megacore shards batch tiles
        ),
        cost_estimate=cost,
    )(x, w1p, b1p, w2p, b2p, w3p, b3p, w4p, b4p)

    return out_padded[:batch, :]


def init_params(key, input_dim, output_dim, h1, h2, h3):
    """Deterministic init (PyTorch-like uniform(-1/sqrt(fan_in), 1/sqrt(fan_in)))."""
    dims = [(input_dim, h1), (h1, h2), (h2, h3), (h3, output_dim)]
    params = []
    for fan_in, fan_out in dims:
        key, kw, kb = jax.random.split(key, 3)
        bound = 1.0 / jnp.sqrt(float(fan_in))
        w = jax.random.uniform(kw, (fan_in, fan_out), jnp.float32, -bound, bound)
        b = jax.random.uniform(kb, (1, fan_out), jnp.float32, -bound, bound)
        params.extend([w, b])
    return tuple(params)


def reference_forward(x, params):
    w1, b1, w2, b2, w3, b3, w4, b4 = params
    h = jnp.tanh(x @ w1 + b1)
    h = jnp.tanh(h @ w2 + b2)
    h = jnp.tanh(h @ w3 + b3)
    return h @ w4 + b4


if __name__ == "__main__":
    key = jax.random.PRNGKey(0)
    batch, input_dim, output_dim = 8, 16, 4
    h1, h2, h3 = 32, 32, 32

    key, kx = jax.random.split(key)
    x = jax.random.normal(kx, (batch, input_dim), jnp.float32)
    params = init_params(key, input_dim, output_dim, h1, h2, h3)

    fwd = jax.jit(functools.partial(mlp_forward, block_m=1024))

    # ---- f32 path: exact PyTorch Linear/Tanh numerics (single grid step) --------
    params_f32 = prepare_params(params, compute_dtype=jnp.float32)
    out = jax.block_until_ready(fwd(x, params_f32))
    ref = reference_forward(x, params)
    assert out.shape == (batch, output_dim)
    assert jnp.allclose(out, ref, atol=1e-5, rtol=1e-5)

    # ---- larger batch: adaptive multi-tile grid + row padding (f32, exact) ------
    key, kx2 = jax.random.split(key)
    x_big = jax.random.normal(kx2, (1000, input_dim), jnp.float32)
    out_big = jax.block_until_ready(fwd(x_big, params_f32))
    ref_big = reference_forward(x_big, params)
    assert out_big.shape == (1000, output_dim)
    assert jnp.allclose(out_big, ref_big, atol=1e-4, rtol=1e-4)

    # ---- default bf16-MXU path (f32 accumulate/bias/tanh): loose tolerance ------
    params_bf16 = prepare_params(params)  # compute_dtype=bfloat16
    out_big_bf16 = jax.block_until_ready(fwd(x_big, params_bf16))
    assert out_big_bf16.shape == (1000, output_dim)
    rel_err = jnp.linalg.norm(out_big_bf16 - ref_big) / jnp.linalg.norm(ref_big)
    assert rel_err < 2e-2, float(rel_err)

    print("KERNEL_OK")
</pallas_src>

<mosaic_0001>
module attributes {stable_mosaic.version = 11 : i64} {
  func.func @mlp_kernel(%arg0: i32, %arg1: memref<8x16xf32, #tpu.memory_space<vmem>>, %arg2: memref<16x128xf32, #tpu.memory_space<vmem>>, %arg3: memref<1x128xf32, #tpu.memory_space<vmem>>, %arg4: memref<128x128xf32, #tpu.memory_space<vmem>>, %arg5: memref<1x128xf32, #tpu.memory_space<vmem>>, %arg6: memref<128x128xf32, #tpu.memory_space<vmem>>, %arg7: memref<1x128xf32, #tpu.memory_space<vmem>>, %arg8: memref<128x4xf32, #tpu.memory_space<vmem>>, %arg9: memref<1x4xf32, #tpu.memory_space<vmem>>, %arg10: memref<8x4xf32, #tpu.memory_space<vmem>>) attributes {dimension_semantics = [#tpu.dimension_semantics<parallel>], iteration_bounds = array<i64: 1>, scalar_prefetch = 0 : i64, scratch_operands = 0 : i64, tpu.core_type = #tpu.core_type<tc>, window_params = [{transform_indices = @transform_0, window_bounds = array<i64: 8, 16>}, {pipeline_mode = #tpu.pipeline_mode<synchronous>, transform_indices = @transform_1, window_bounds = array<i64: 16, 128>}, {pipeline_mode = #tpu.pipeline_mode<synchronous>, transform_indices = @transform_2, window_bounds = array<i64: 1, 128>}, {pipeline_mode = #tpu.pipeline_mode<synchronous>, transform_indices = @transform_3, window_bounds = array<i64: 128, 128>}, {pipeline_mode = #tpu.pipeline_mode<synchronous>, transform_indices = @transform_4, window_bounds = array<i64: 1, 128>}, {pipeline_mode = #tpu.pipeline_mode<synchronous>, transform_indices = @transform_5, window_bounds = array<i64: 128, 128>}, {pipeline_mode = #tpu.pipeline_mode<synchronous>, transform_indices = @transform_6, window_bounds = array<i64: 1, 128>}, {pipeline_mode = #tpu.pipeline_mode<synchronous>, transform_indices = @transform_7, window_bounds = array<i64: 128, 4>}, {pipeline_mode = #tpu.pipeline_mode<synchronous>, transform_indices = @transform_8, window_bounds = array<i64: 1, 4>}, {transform_indices = @transform_9, window_bounds = array<i64: 8, 4>}]} {
    %c0 = arith.constant 0 : index
    %c0_0 = arith.constant 0 : index
    %0 = vector.load %arg1[%c0, %c0_0] : memref<8x16xf32, #tpu.memory_space<vmem>>, vector<8x16xf32>
    %c0_1 = arith.constant 0 : index
    %c0_2 = arith.constant 0 : index
    %1 = vector.load %arg2[%c0_1, %c0_2] : memref<16x128xf32, #tpu.memory_space<vmem>>, vector<16x128xf32>
    %cst = arith.constant dense<0.000000e+00> : vector<8x128xf32>
    %2 = tpu.matmul %0, %1, %cst {dimension_numbers = #tpu.dot_dimension_numbers<[1], [0], [0], [1], [0, 0, 1, 1], [], []>} : vector<8x16xf32>, vector<16x128xf32>, vector<8x128xf32> -> vector<8x128xf32>
    %c0_3 = arith.constant 0 : index
    %c0_4 = arith.constant 0 : index
    %3 = vector.load %arg3[%c0_3, %c0_4] : memref<1x128xf32, #tpu.memory_space<vmem>>, vector<1x128xf32>
    %4 = vector.broadcast %3 : vector<1x128xf32> to vector<8x128xf32>
    %5 = arith.addf %2, %4 : vector<8x128xf32>
    %6 = math.tanh %5 : vector<8x128xf32>
    %c0_5 = arith.constant 0 : index
    %c0_6 = arith.constant 0 : index
    %7 = vector.load %arg4[%c0_5, %c0_6] : memref<128x128xf32, #tpu.memory_space<vmem>>, vector<128x128xf32>
    %cst_7 = arith.constant dense<0.000000e+00> : vector<8x128xf32>
    %8 = tpu.matmul %6, %7, %cst_7 {dimension_numbers = #tpu.dot_dimension_numbers<[1], [0], [0], [1], [0, 0, 1, 1], [], []>} : vector<8x128xf32>, vector<128x128xf32>, vector<8x128xf32> -> vector<8x128xf32>
    %c0_8 = arith.constant 0 : index
    %c0_9 = arith.constant 0 : index
    %9 = vector.load %arg5[%c0_8, %c0_9] : memref<1x128xf32, #tpu.memory_space<vmem>>, vector<1x128xf32>
    %10 = vector.broadcast %9 : vector<1x128xf32> to vector<8x128xf32>
    %11 = arith.addf %8, %10 : vector<8x128xf32>
    %12 = math.tanh %11 : vector<8x128xf32>
    %c0_10 = arith.constant 0 : index
    %c0_11 = arith.constant 0 : index
    %13 = vector.load %arg6[%c0_10, %c0_11] : memref<128x128xf32, #tpu.memory_space<vmem>>, vector<128x128xf32>
    %cst_12 = arith.constant dense<0.000000e+00> : vector<8x128xf32>
    %14 = tpu.matmul %12, %13, %cst_12 {dimension_numbers = #tpu.dot_dimension_numbers<[1], [0], [0], [1], [0, 0, 1, 1], [], []>} : vector<8x128xf32>, vector<128x128xf32>, vector<8x128xf32> -> vector<8x128xf32>
    %c0_13 = arith.constant 0 : index
    %c0_14 = arith.constant 0 : index
    %15 = vector.load %arg7[%c0_13, %c0_14] : memref<1x128xf32, #tpu.memory_space<vmem>>, vector<1x128xf32>
    %16 = vector.broadcast %15 : vector<1x128xf32> to vector<8x128xf32>
    %17 = arith.addf %14, %16 : vector<8x128xf32>
    %18 = math.tanh %17 : vector<8x128xf32>
    %c0_15 = arith.constant 0 : index
    %c0_16 = arith.constant 0 : index
    %19 = vector.load %arg8[%c0_15, %c0_16] : memref<128x4xf32, #tpu.memory_space<vmem>>, vector<128x4xf32>
    %cst_17 = arith.constant dense<0.000000e+00> : vector<8x4xf32>
    %20 = tpu.matmul %18, %19, %cst_17 {dimension_numbers = #tpu.dot_dimension_numbers<[1], [0], [0], [1], [0, 0, 1, 1], [], []>} : vector<8x128xf32>, vector<128x4xf32>, vector<8x4xf32> -> vector<8x4xf32>
    %c0_18 = arith.constant 0 : index
    %c0_19 = arith.constant 0 : index
    %21 = vector.load %arg9[%c0_18, %c0_19] : memref<1x4xf32, #tpu.memory_space<vmem>>, vector<1x4xf32>
    %22 = vector.broadcast %21 : vector<1x4xf32> to vector<8x4xf32>
    %23 = arith.addf %20, %22 : vector<8x4xf32>
    %c0_20 = arith.constant 0 : index
    %c0_21 = arith.constant 0 : index
    %24 = vector.load %arg10[%c0_20, %c0_21] : memref<8x4xf32, #tpu.memory_space<vmem>>, vector<8x4xf32>
    tpu.vector_store %arg10[%c0_20, %c0_21], %23 {strides = array<i32>} : memref<8x4xf32, #tpu.memory_space<vmem>>, vector<8x4xf32>,
    return
  }
  func.func @transform_0(%arg0: i32) -> (i32, i32) {
    %c0_i32 = arith.constant 0 : i32
    %c0_i32_0 = arith.constant 0 : i32
    return %arg0, %c0_i32 : i32, i32
  }
  func.func @transform_1(%arg0: i32) -> (i32, i32) {
    %c0_i32 = arith.constant 0 : i32
    %c0_i32_0 = arith.constant 0 : i32
    %c0_i32_1 = arith.constant 0 : i32
    return %c0_i32, %c0_i32_0 : i32, i32
  }
  func.func @transform_2(%arg0: i32) -> (i32, i32) {
    %c0_i32 = arith.constant 0 : i32
    %c0_i32_0 = arith.constant 0 : i32
    %c0_i32_1 = arith.constant 0 : i32
    return %c0_i32, %c0_i32_0 : i32, i32
  }
  func.func @transform_3(%arg0: i32) -> (i32, i32) {
    %c0_i32 = arith.constant 0 : i32
    %c0_i32_0 = arith.constant 0 : i32
    %c0_i32_1 = arith.constant 0 : i32
    return %c0_i32, %c0_i32_0 : i32, i32
  }
  func.func @transform_4(%arg0: i32) -> (i32, i32) {
    %c0_i32 = arith.constant 0 : i32
    %c0_i32_0 = arith.constant 0 : i32
    %c0_i32_1 = arith.constant 0 : i32
    return %c0_i32, %c0_i32_0 : i32, i32
  }
  func.func @transform_5(%arg0: i32) -> (i32, i32) {
    %c0_i32 = arith.constant 0 : i32
    %c0_i32_0 = arith.constant 0 : i32
    %c0_i32_1 = arith.constant 0 : i32
    return %c0_i32, %c0_i32_0 : i32, i32
  }
  func.func @transform_6(%arg0: i32) -> (i32, i32) {
    %c0_i32 = arith.constant 0 : i32
    %c0_i32_0 = arith.constant 0 : i32
    %c0_i32_1 = arith.constant 0 : i32
    return %c0_i32, %c0_i32_0 : i32, i32
  }
  func.func @transform_7(%arg0: i32) -> (i32, i32) {
    %c0_i32 = arith.constant 0 : i32
    %c0_i32_0 = arith.constant 0 : i32
    %c0_i32_1 = arith.constant 0 : i32
    return %c0_i32, %c0_i32_0 : i32, i32
  }
  func.func @transform_8(%arg0: i32) -> (i32, i32) {
    %c0_i32 = arith.constant 0 : i32
    %c0_i32_0 = arith.constant 0 : i32
    %c0_i32_1 = arith.constant 0 : i32
    return %c0_i32, %c0_i32_0 : i32, i32
  }
  func.func @transform_9(%arg0: i32) -> (i32, i32) {
    %c0_i32 = arith.constant 0 : i32
    %c0_i32_0 = arith.constant 0 : i32
    return %arg0, %c0_i32 : i32, i32
  }
}

</mosaic_0001>

<llo_original>
// kernel: mlp_forward.1
$region0: #{mlp_forward.1}
  #allocation0 [shape = 'u32[]', space=smem, size = 0x4, offset = 0x4, fixed_abs, tag = 'smem constant byte address 0x4 - core index']
  #allocation1 [shape = 'u32[144,128]{1,0:T(1,128)}', space=vmem, size = 0x12000, scoped, tag = 'internal scratch']
  %s0 = inlined_call_operand.vmem [shape: f32[8,16], index: 0, kind: input, shape index: {}]
  %s1 = inlined_call_operand.hbm [shape: f32[16,128], index: 1, kind: input, shape index: {}]
  %s2 = inlined_call_operand.vmem [shape: f32[1,128], index: 2, kind: input, shape index: {}]
  %s3 = inlined_call_operand.vmem [shape: f32[128,128], index: 3, kind: input, shape index: {}]
  %s4 = inlined_call_operand.vmem [shape: f32[1,128], index: 4, kind: input, shape index: {}]
  %s5 = inlined_call_operand.hbm [shape: f32[128,128], index: 5, kind: input, shape index: {}]
  %s6 = inlined_call_operand.vmem [shape: f32[1,128], index: 6, kind: input, shape index: {}]
  %s7 = inlined_call_operand.vmem [shape: f32[128,4], index: 7, kind: input, shape index: {}]
  %s8 = inlined_call_operand.vmem [shape: f32[1,4], index: 8, kind: input, shape index: {}]
  %s9 = inlined_call_operand.vmem [shape: f32[8,4], index: 9, kind: output, shape index: {}]
  %s10 = sld [smem:[#allocation0]]
  $region54: #{mlp_forward.1} parent=0
    _
  %s12 = ssub.s32 1, %s10
  %s13 = scalar_select 0, %s12, %s10
  $region1: #{mlp_forward.1} parent=0
    #allocation2 [shape = 'u8[8192]{0}', space=vmem, size = 0x2000, scoped, tag = 'input window, operand 1, single buffered']
    #allocation3 [shape = 's32[1]{0}', space=sflag, size = 0x4, scoped, tag = 'scoped memory for mlp_forward.1']
    #allocation4 [shape = 'u8[65536]{0}', space=vmem, size = 0x10000, scoped, tag = 'input window, operand 5, single buffered']
    #allocation5 [shape = 's32[1]{0}', space=sflag, size = 0x4, scoped, tag = 'scoped memory for mlp_forward.1']
    %14 = vsyncpa [#allocation3], 0
    %15 = vsyncpa [#allocation5], 0
    // Predicated region
    $region2: #{mlp_forward.1} parent=1 // pred_check
      _
    $region3: #{mlp_forward.1} parent=1 // pred_check_branch
      %17 = sbr.rel (0) target = $region5
    $region4: #{mlp_forward.1} parent=1 // pred_region
      _
    $region5: #{mlp_forward.1} parent=1 // pred_fallthru
      _
    // Predicated region
    $region6: #{mlp_forward.1} parent=1 // pred_check
      _
    $region7: #{mlp_forward.1} parent=1 // pred_check_branch
      %19 = sbr.rel (0) target = $region9
    $region8: #{mlp_forward.1} parent=1 // pred_region
      %s21 = ssub.s32 256, 256
      %22 = vsyncadd [#allocation3], %s21
      %s23 = sshll.u32 [#allocation2], 4
      %s24 = int_to_ptr.vmem [resolvable:$true] %s23
      %29 = dma.hbm_to_vmem [thread:$0]  %s1, 256, %s24, [#allocation3], 128, 128, 8
    $region9: #{mlp_forward.1} parent=1 // pred_fallthru
      _
    // Predicated region
    $region10: #{mlp_forward.1} parent=1 // pred_check
      _
    $region11: #{mlp_forward.1} parent=1 // pred_check_branch
      %31 = sbr.rel (0) target = $region13
    $region12: #{mlp_forward.1} parent=1 // pred_region
      _
    $region13: #{mlp_forward.1} parent=1 // pred_fallthru
      _
    // Predicated region
    $region14: #{mlp_forward.1} parent=1 // pred_check
      _
    $region15: #{mlp_forward.1} parent=1 // pred_check_branch
      %33 = sbr.rel (0) target = $region17
    $region16: #{mlp_forward.1} parent=1 // pred_region
      _
    $region17: #{mlp_forward.1} parent=1 // pred_fallthru
      _
    // Predicated region
    $region18: #{mlp_forward.1} parent=1 // pred_check
      _
    $region19: #{mlp_forward.1} parent=1 // pred_check_branch
      %35 = sbr.rel (0) target = $region21
    $region20: #{mlp_forward.1} parent=1 // pred_region
      _
    $region21: #{mlp_forward.1} parent=1 // pred_fallthru
      _
    // Predicated region
    $region22: #{mlp_forward.1} parent=1 // pred_check
      _
    $region23: #{mlp_forward.1} parent=1 // pred_check_branch
      %37 = sbr.rel (0) target = $region25
    $region24: #{mlp_forward.1} parent=1 // pred_region
      %s39 = ssub.s32 2048, 2048
      %40 = vsyncadd [#allocation5], %s39
      %s41 = sshll.u32 [#allocation4], 4
      %s42 = int_to_ptr.vmem [resolvable:$true] %s41
      %47 = dma.hbm_to_vmem [thread:$0]  %s5, 2048, %s42, [#allocation5], 128, 128, 8
    $region25: #{mlp_forward.1} parent=1 // pred_fallthru
      _
    // Predicated region
    $region26: #{mlp_forward.1} parent=1 // pred_check
      _
    $region27: #{mlp_forward.1} parent=1 // pred_check_branch
      %49 = sbr.rel (0) target = $region29
    $region28: #{mlp_forward.1} parent=1 // pred_region
      _
    $region29: #{mlp_forward.1} parent=1 // pred_fallthru
      _
    // Predicated region
    $region30: #{mlp_forward.1} parent=1 // pred_check
      _
    $region31: #{mlp_forward.1} parent=1 // pred_check_branch
      %51 = sbr.rel (0) target = $region33
    $region32: #{mlp_forward.1} parent=1 // pred_region
      _
    $region33: #{mlp_forward.1} parent=1 // pred_fallthru
      _
    // Predicated region
    $region34: #{mlp_forward.1} parent=1 // pred_check
      _
    $region35: #{mlp_forward.1} parent=1 // pred_check_branch
      %53 = sbr.rel (0) target = $region37
    $region36: #{mlp_forward.1} parent=1 // pred_region
      _
    $region37: #{mlp_forward.1} parent=1 // pred_fallthru
      _
    // Predicated region
    $region38: #{mlp_forward.1} parent=1 // pred_check
      _
    $region39: #{mlp_forward.1} parent=1 // pred_check_branch
      %55 = sbr.rel (0) target = $region41
    $region40: #{mlp_forward.1} parent=1 // pred_region
      %56 = dma.done [#allocation3], 256
    $region41: #{mlp_forward.1} parent=1 // pred_fallthru
      _
    // Predicated region
    $region42: #{mlp_forward.1} parent=1 // pred_check
      _
    $region43: #{mlp_forward.1} parent=1 // pred_check_branch
      %58 = sbr.rel (0) target = $region45
    $region44: #{mlp_forward.1} parent=1 // pred_region
      %59 = dma.done [#allocation5], 2048
    $region45: #{mlp_forward.1} parent=1 // pred_fallthru
      _
    %v60 = vld [vmem:[%s0] sm:$0xff]
    %v61 = vld [vmem:[#allocation2] sm:$0xff]
    %v62 = vld [vmem:[#allocation2 + $0x8] sm:$0xff]
    %v63 = vld [vmem:[%s2] sm:$0x1]
    %v65 = vlaneseq
    %v66 = vshrl.u32 %v65, 7
    %v67 = vsub.s32 0, %v66
    %v68 = vrot.slane %v63, %v67
    %vm70 = vcmask 130048
    %v72 = vsel %vm70, %v60, 0
    %74 = vmatprep.subr.mxu0 0.0
    %75 = vmatpush1.msra.mxu0 %v61
    %76 = vmatprep.subr.mxu0 0.0
    %77 = vmatpush1.msra.mxu0 %v62
    %78 = vmatprep.subr.mxu0 0.0
    %79 = vmatpush1.msra.mxu0 0.0
    %80 = vmatprep.subr.mxu0 0.0
    %81 = vmatpush1.msra.mxu0 0.0
    %82 = vmatprep.subr.mxu0 0.0
    %83 = vmatpush1.msra.mxu0 0.0
    %84 = vmatprep.subr.mxu0 0.0
    %85 = vmatpush1.msra.mxu0 0.0
    %86 = vmatprep.subr.mxu0 0.0
    %87 = vmatpush1.msra.mxu0 0.0
    %88 = vmatprep.subr.mxu0 0.0
    %89 = vmatpush1.msra.mxu0 0.0
    %90 = vmatprep.subr.mxu0 0.0
    %91 = vmatpush1.msra.mxu0 0.0
    %92 = vmatprep.subr.mxu0 0.0
    %93 = vmatpush1.msra.mxu0 0.0
    %94 = vmatprep.subr.mxu0 0.0
    %95 = vmatpush1.msra.mxu0 0.0
    %96 = vmatprep.subr.mxu0 0.0
    %97 = vmatpush1.msra.mxu0 0.0
    %98 = vmatprep.subr.mxu0 0.0
    %99 = vmatpush1.msra.mxu0 0.0
    %100 = vmatprep.subr.mxu0 0.0
    %101 = vmatpush1.msra.mxu0 0.0
    %102 = vmatprep.subr.mxu0 0.0
    %103 = vmatpush1.msra.mxu0 0.0
    %104 = vmatprep.subr.mxu0 0.0
    %105 = vmatpush1.msra.mxu0 0.0
    %106 = vmatprep.subr.mxu0 0.0
    %107 = vmatpush1.msra.mxu0 0.0
    %108 = vmatprep.subr.mxu0 0.0
    %109 = vmatpush1.msra.mxu0 0.0
    %110 = vmatprep.subr.mxu0 0.0
    %111 = vmatpush1.msra.mxu0 0.0
    %112 = vmatprep.subr.mxu0 0.0
    %113 = vmatpush1.msra.mxu0 0.0
    %114 = vmatprep.subr.mxu0 0.0
    %115 = vmatpush1.msra.mxu0 0.0
    %116 = vmatprep.subr.mxu0 0.0
    %117 = vmatpush1.msra.mxu0 0.0
    %118 = vmatprep.subr.mxu0 0.0
    %119 = vmatpush1.msra.mxu0 0.0
    %120 = vmatprep.subr.mxu0 0.0
    %121 = vmatpush1.msra.mxu0 0.0
    %122 = vmatprep.subr.mxu0 0.0
    %123 = vmatpush1.msra.mxu0 0.0
    %124 = vmatprep.subr.mxu0 0.0
    %125 = vmatpush1.msra.mxu0 0.0
    %126 = vmatprep.subr.mxu0 0.0
    %127 = vmatpush1.msra.mxu0 0.0
    %128 = vmatprep.subr.mxu0 0.0
    %129 = vmatpush1.msra.mxu0 0.0
    %130 = vmatprep.subr.mxu0 0.0
    %131 = vmatpush1.msra.mxu0 0.0
    %132 = vmatprep.subr.mxu0 0.0
    %133 = vmatpush1.msra.mxu0 0.0
    %134 = vmatprep.subr.mxu0 0.0
    %135 = vmatpush1.msra.mxu0 0.0
    %136 = vmatprep.subr.mxu0 0.0
    %137 = vmatpush1.msra.mxu0 0.0
    %138 = vmatprep.mubr.f32.mxu0 0.0
    %139 = vmatmul.mubr.f32.gmra.mrb[0].mxu0 %v72
    %v140 = vpop.f32.mrb[0].mxu0
    %v141 = vadd.f32 %v68, %v140
    %v142 = vpop.f32.mrb[0].mxu0
    %143 = vdwg.mxu0
    %v144 = vtanh.pop %v141
    %v145 = vld [vmem:[%s3] sm:$0xff]
    %v146 = vld [vmem:[%s3 + $0x8] sm:$0xff]
    %v147 = vld [vmem:[%s3 + $0x10] sm:$0xff]
    %v148 = vld [vmem:[%s3 + $0x18] sm:$0xff]
    %v149 = vld [vmem:[%s3 + $0x20] sm:$0xff]
    %v150 = vld [vmem:[%s3 + $0x28] sm:$0xff]
    %v151 = vld [vmem:[%s3 + $0x30] sm:$0xff]
    %v152 = vld [vmem:[%s3 + $0x38] sm:$0xff]
    %v153 = vld [vmem:[%s3 + $0x40] sm:$0xff]
    %v154 = vld [vmem:[%s3 + $0x48] sm:$0xff]
    %v155 = vld [vmem:[%s3 + $0x50] sm:$0xff]
    %v156 = vld [vmem:[%s3 + $0x58] sm:$0xff]
    %v157 = vld [vmem:[%s3 + $0x60] sm:$0xff]
    %v158 = vld [vmem:[%s3 + $0x68] sm:$0xff]
    %v159 = vld [vmem:[%s3 + $0x70] sm:$0xff]
    %v160 = vld [vmem:[%s3 + $0x78] sm:$0xff]
    %v161 = vld [vmem:[%s4] sm:$0x1]
    %v163 = vlaneseq
    %v164 = vshrl.u32 %v163, 7
    %v165 = vsub.s32 0, %v164
    %v166 = vrot.slane %v161, %v165
    %168 = vmatprep.subr.mxu0 0.0
    %169 = vmatpush1.msra.mxu0 %v145
    %170 = vmatprep.subr.mxu0 0.0
    %171 = vmatpush1.msra.mxu0 %v146
    %172 = vmatprep.subr.mxu0 0.0
    %173 = vmatpush1.msra.mxu0 %v147
    %174 = vmatprep.subr.mxu0 0.0
    %175 = vmatpush1.msra.mxu0 %v148
    %176 = vmatprep.subr.mxu0 0.0
    %177 = vmatpush1.msra.mxu0 %v149
    %178 = vmatprep.subr.mxu0 0.0
    %179 = vmatpush1.msra.mxu0 %v150
    %180 = vmatprep.subr.mxu0 0.0
    %181 = vmatpush1.msra.mxu0 %v151
    %182 = vmatprep.subr.mxu0 0.0
    %183 = vmatpush1.msra.mxu0 %v152
    %184 = vmatprep.subr.mxu0 0.0
    %185 = vmatpush1.msra.mxu0 %v153
    %186 = vmatprep.subr.mxu0 0.0
    %187 = vmatpush1.msra.mxu0 %v154
    %188 = vmatprep.subr.mxu0 0.0
    %189 = vmatpush1.msra.mxu0 %v155
    %190 = vmatprep.subr.mxu0 0.0
    %191 = vmatpush1.msra.mxu0 %v156
    %192 = vmatprep.subr.mxu0 0.0
    %193 = vmatpush1.msra.mxu0 %v157
    %194 = vmatprep.subr.mxu0 0.0
    %195 = vmatpush1.msra.mxu0 %v158
    %196 = vmatprep.subr.mxu0 0.0
    %197 = vmatpush1.msra.mxu0 %v159
    %198 = vmatprep.subr.mxu0 0.0
    %199 = vmatpush1.msra.mxu0 %v160
    %200 = vmatprep.subr.mxu0 0.0
    %201 = vmatpush1.msra.mxu0 0.0
    %202 = vmatprep.subr.mxu0 0.0
    %203 = vmatpush1.msra.mxu0 0.0
    %204 = vmatprep.subr.mxu0 0.0
    %205 = vmatpush1.msra.mxu0 0.0
    %206 = vmatprep.subr.mxu0 0.0
    %207 = vmatpush1.msra.mxu0 0.0
    %208 = vmatprep.subr.mxu0 0.0
    %209 = vmatpush1.msra.mxu0 0.0
    %210 = vmatprep.subr.mxu0 0.0
    %211 = vmatpush1.msra.mxu0 0.0
    %212 = vmatprep.subr.mxu0 0.0
    %213 = vmatpush1.msra.mxu0 0.0
    %214 = vmatprep.subr.mxu0 0.0
    %215 = vmatpush1.msra.mxu0 0.0
    %216 = vmatprep.subr.mxu0 0.0
    %217 = vmatpush1.msra.mxu0 0.0
    %218 = vmatprep.subr.mxu0 0.0
    %219 = vmatpush1.msra.mxu0 0.0
    %220 = vmatprep.subr.mxu0 0.0
    %221 = vmatpush1.msra.mxu0 0.0
    %222 = vmatprep.subr.mxu0 0.0
    %223 = vmatpush1.msra.mxu0 0.0
    %224 = vmatprep.subr.mxu0 0.0
    %225 = vmatpush1.msra.mxu0 0.0
    %226 = vmatprep.subr.mxu0 0.0
    %227 = vmatpush1.msra.mxu0 0.0
    %228 = vmatprep.subr.mxu0 0.0
    %229 = vmatpush1.msra.mxu0 0.0
    %230 = vmatprep.subr.mxu0 0.0
    %231 = vmatpush1.msra.mxu0 0.0
    %232 = vmatprep.mubr.f32.mxu0 0.0
    %233 = vmatmul.mubr.f32.gmra.mrb[0].mxu0 %v144
    %v234 = vpop.f32.mrb[0].mxu0
    %v235 = vadd.f32 %v166, %v234
    %v236 = vpop.f32.mrb[0].mxu0
    %237 = vdwg.mxu0
    %v238 = vtanh.pop %v235
    %v239 = vld [vmem:[#allocation4] sm:$0xff]
    %v240 = vld [vmem:[#allocation4 + $0x8] sm:$0xff]
    %v241 = vld [vmem:[#allocation4 + $0x10] sm:$0xff]
    %v242 = vld [vmem:[#allocation4 + $0x18] sm:$0xff]
    %v243 = vld [vmem:[#allocation4 + $0x20] sm:$0xff]
    %v244 = vld [vmem:[#allocation4 + $0x28] sm:$0xff]
    %v245 = vld [vmem:[#allocation4 + $0x30] sm:$0xff]
    %v246 = vld [vmem:[#allocation4 + $0x38] sm:$0xff]
    %v247 = vld [vmem:[#allocation4 + $0x40] sm:$0xff]
    %v248 = vld [vmem:[#allocation4 + $0x48] sm:$0xff]
    %v249 = vld [vmem:[#allocation4 + $0x50] sm:$0xff]
    %v250 = vld [vmem:[#allocation4 + $0x58] sm:$0xff]
    %v251 = vld [vmem:[#allocation4 + $0x60] sm:$0xff]
    %v252 = vld [vmem:[#allocation4 + $0x68] sm:$0xff]
    %v253 = vld [vmem:[#allocation4 + $0x70] sm:$0xff]
    %v254 = vld [vmem:[#allocation4 + $0x78] sm:$0xff]
    %v255 = vld [vmem:[%s6] sm:$0x1]
    %v257 = vlaneseq
    %v258 = vshrl.u32 %v257, 7
    %v259 = vsub.s32 0, %v258
    %v260 = vrot.slane %v255, %v259
    %262 = vmatprep.subr.mxu0 0.0
    %263 = vmatpush1.msra.mxu0 %v239
    %264 = vmatprep.subr.mxu0 0.0
    %265 = vmatpush1.msra.mxu0 %v240
    %266 = vmatprep.subr.mxu0 0.0
    %267 = vmatpush1.msra.mxu0 %v241
    %268 = vmatprep.subr.mxu0 0.0
    %269 = vmatpush1.msra.mxu0 %v242
    %270 = vmatprep.subr.mxu0 0.0
    %271 = vmatpush1.msra.mxu0 %v243
    %272 = vmatprep.subr.mxu0 0.0
    %273 = vmatpush1.msra.mxu0 %v244
    %274 = vmatprep.subr.mxu0 0.0
    %275 = vmatpush1.msra.mxu0 %v245
    %276 = vmatprep.subr.mxu0 0.0
    %277 = vmatpush1.msra.mxu0 %v246
    %278 = vmatprep.subr.mxu0 0.0
    %279 = vmatpush1.msra.mxu0 %v247
    %280 = vmatprep.subr.mxu0 0.0
    %281 = vmatpush1.msra.mxu0 %v248
    %282 = vmatprep.subr.mxu0 0.0
    %283 = vmatpush1.msra.mxu0 %v249
    %284 = vmatprep.subr.mxu0 0.0
    %285 = vmatpush1.msra.mxu0 %v250
    %286 = vmatprep.subr.mxu0 0.0
    %287 = vmatpush1.msra.mxu0 %v251
    %288 = vmatprep.subr.mxu0 0.0
    %289 = vmatpush1.msra.mxu0 %v252
    %290 = vmatprep.subr.mxu0 0.0
    %291 = vmatpush1.msra.mxu0 %v253
    %292 = vmatprep.subr.mxu0 0.0
    %293 = vmatpush1.msra.mxu0 %v254
    %294 = vmatprep.subr.mxu0 0.0
    %295 = vmatpush1.msra.mxu0 0.0
    %296 = vmatprep.subr.mxu0 0.0
    %297 = vmatpush1.msra.mxu0 0.0
    %298 = vmatprep.subr.mxu0 0.0
    %299 = vmatpush1.msra.mxu0 0.0
    %300 = vmatprep.subr.mxu0 0.0
    %301 = vmatpush1.msra.mxu0 0.0
    %302 = vmatprep.subr.mxu0 0.0
    %303 = vmatpush1.msra.mxu0 0.0
    %304 = vmatprep.subr.mxu0 0.0
    %305 = vmatpush1.msra.mxu0 0.0
    %306 = vmatprep.subr.mxu0 0.0
    %307 = vmatpush1.msra.mxu0 0.0
    %308 = vmatprep.subr.mxu0 0.0
    %309 = vmatpush1.msra.mxu0 0.0
    %310 = vmatprep.subr.mxu0 0.0
    %311 = vmatpush1.msra.mxu0 0.0
    %312 = vmatprep.subr.mxu0 0.0
    %313 = vmatpush1.msra.mxu0 0.0
    %314 = vmatprep.subr.mxu0 0.0
    %315 = vmatpush1.msra.mxu0 0.0
    %316 = vmatprep.subr.mxu0 0.0
    %317 = vmatpush1.msra.mxu0 0.0
    %318 = vmatprep.subr.mxu0 0.0
    %319 = vmatpush1.msra.mxu0 0.0
    %320 = vmatprep.subr.mxu0 0.0
    %321 = vmatpush1.msra.mxu0 0.0
    %322 = vmatprep.subr.mxu0 0.0
    %323 = vmatpush1.msra.mxu0 0.0
    %324 = vmatprep.subr.mxu0 0.0
    %325 = vmatpush1.msra.mxu0 0.0
    %326 = vmatprep.mubr.f32.mxu0 0.0
    %327 = vmatmul.mubr.f32.gmra.mrb[0].mxu0 %v238
    %v328 = vpop.f32.mrb[0].mxu0
    %v329 = vadd.f32 %v260, %v328
    %v330 = vpop.f32.mrb[0].mxu0
    %331 = vdwg.mxu0
    %v332 = vtanh.pop %v329
    %v333 = vld [vmem:[%s7] sm:$0xff]
    %v334 = vld [vmem:[%s7 + $0x8] sm:$0xff]
    %v335 = vld [vmem:[%s7 + $0x10] sm:$0xff]
    %v336 = vld [vmem:[%s7 + $0x18] sm:$0xff]
    %v337 = vld [vmem:[%s7 + $0x20] sm:$0xff]
    %v338 = vld [vmem:[%s7 + $0x28] sm:$0xff]
    %v339 = vld [vmem:[%s7 + $0x30] sm:$0xff]
    %v340 = vld [vmem:[%s7 + $0x38] sm:$0xff]
    %v341 = vld [vmem:[%s7 + $0x40] sm:$0xff]
    %v342 = vld [vmem:[%s7 + $0x48] sm:$0xff]
    %v343 = vld [vmem:[%s7 + $0x50] sm:$0xff]
    %v344 = vld [vmem:[%s7 + $0x58] sm:$0xff]
    %v345 = vld [vmem:[%s7 + $0x60] sm:$0xff]
    %v346 = vld [vmem:[%s7 + $0x68] sm:$0xff]
    %v347 = vld [vmem:[%s7 + $0x70] sm:$0xff]
    %v348 = vld [vmem:[%s7 + $0x78] sm:$0xff]
    %v349 = vld [vmem:[%s8] sm:$0x1]
    %v351 = vlaneseq
    %v352 = vshrl.u32 %v351, 7
    %v353 = vsub.s32 0, %v352
    %v354 = vrot.slane %v349, %v353
    %356 = vmatprep.subr.mxu0 0.0
    %357 = vmatpush1.msra.mxu0 %v333
    %358 = vmatprep.subr.mxu0 0.0
    %359 = vmatpush1.msra.mxu0 %v334
    %360 = vmatprep.subr.mxu0 0.0
    %361 = vmatpush1.msra.mxu0 %v335
    %362 = vmatprep.subr.mxu0 0.0
    %363 = vmatpush1.msra.mxu0 %v336
    %364 = vmatprep.subr.mxu0 0.0
    %365 = vmatpush1.msra.mxu0 %v337
    %366 = vmatprep.subr.mxu0 0.0
    %367 = vmatpush1.msra.mxu0 %v338
    %368 = vmatprep.subr.mxu0 0.0
    %369 = vmatpush1.msra.mxu0 %v339
    %370 = vmatprep.subr.mxu0 0.0
    %371 = vmatpush1.msra.mxu0 %v340
    %372 = vmatprep.subr.mxu0 0.0
    %373 = vmatpush1.msra.mxu0 %v341
    %374 = vmatprep.subr.mxu0 0.0
    %375 = vmatpush1.msra.mxu0 %v342
    %376 = vmatprep.subr.mxu0 0.0
    %377 = vmatpush1.msra.mxu0 %v343
    %378 = vmatprep.subr.mxu0 0.0
    %379 = vmatpush1.msra.mxu0 %v344
    %380 = vmatprep.subr.mxu0 0.0
    %381 = vmatpush1.msra.mxu0 %v345
    %382 = vmatprep.subr.mxu0 0.0
    %383 = vmatpush1.msra.mxu0 %v346
    %384 = vmatprep.subr.mxu0 0.0
    %385 = vmatpush1.msra.mxu0 %v347
    %386 = vmatprep.subr.mxu0 0.0
    %387 = vmatpush1.msra.mxu0 %v348
    %388 = vmatprep.subr.mxu0 0.0
    %389 = vmatpush1.msra.mxu0 0.0
    %390 = vmatprep.subr.mxu0 0.0
    %391 = vmatpush1.msra.mxu0 0.0
    %392 = vmatprep.subr.mxu0 0.0
    %393 = vmatpush1.msra.mxu0 0.0
    %394 = vmatprep.subr.mxu0 0.0
    %395 = vmatpush1.msra.mxu0 0.0
    %396 = vmatprep.subr.mxu0 0.0
    %397 = vmatpush1.msra.mxu0 0.0
    %398 = vmatprep.subr.mxu0 0.0
    %399 = vmatpush1.msra.mxu0 0.0
    %400 = vmatprep.subr.mxu0 0.0
    %401 = vmatpush1.msra.mxu0 0.0
    %402 = vmatprep.subr.mxu0 0.0
    %403 = vmatpush1.msra.mxu0 0.0
    %404 = vmatprep.subr.mxu0 0.0
    %405 = vmatpush1.msra.mxu0 0.0
    %406 = vmatprep.subr.mxu0 0.0
    %407 = vmatpush1.msra.mxu0 0.0
    %408 = vmatprep.subr.mxu0 0.0
    %409 = vmatpush1.msra.mxu0 0.0
    %410 = vmatprep.subr.mxu0 0.0
    %411 = vmatpush1.msra.mxu0 0.0
    %412 = vmatprep.subr.mxu0 0.0
    %413 = vmatpush1.msra.mxu0 0.0
    %414 = vmatprep.subr.mxu0 0.0
    %415 = vmatpush1.msra.mxu0 0.0
    %416 = vmatprep.subr.mxu0 0.0
    %417 = vmatpush1.msra.mxu0 0.0
    %418 = vmatprep.subr.mxu0 0.0
    %419 = vmatpush1.msra.mxu0 0.0
    %420 = vmatprep.mubr.f32.mxu0 0.0
    %421 = vmatmul.mubr.f32.gmra.mrb[0].mxu0 %v332
    %v422 = vpop.f32.mrb[0].mxu0
    %v423 = vadd.f32 %v354, %v422
    %v424 = vpop.f32.mrb[0].mxu0
    %425 = vdwg.mxu0
    %vm426 = vcmask 31744
    %427 = vst.msk [vmem:[%s9] sm:$0xff] %vm426, %v423
    // Predicated region
    $region46: #{mlp_forward.1} parent=1 // pred_check
      _
    $region47: #{mlp_forward.1} parent=1 // pred_check_branch
      %429 = sbr.rel (0) target = $region49
    $region48: #{mlp_forward.1} parent=1 // pred_region
      _
    $region49: #{mlp_forward.1} parent=1 // pred_fallthru
      _
    // Predicated region
    $region50: #{mlp_forward.1} parent=1 // pred_check
      _
    $region51: #{mlp_forward.1} parent=1 // pred_check_branch
      %431 = sbr.rel (0) target = $region53
    $region52: #{mlp_forward.1} parent=1 // pred_region
      _
    $region53: #{mlp_forward.1} parent=1 // pred_fallthru
      _
    %432 = vsyncpa [#allocation3], 1
    %433 = vsyncpa [#allocation5], 1

</llo_original>
